<compile_context>
chip_gen: v7x
topology: tpu7x:2x2x1
jax: 0.10.0
libtpu: 0.0.40
codegen_flags: <defaults>
</compile_context>

<pallas_src>
import functools

import jax
import jax.numpy as jnp
from jax.experimental import pallas as pl
from jax.experimental.pallas import tpu as pltpu


def _swish_kernel(x_ref, o_ref, *, compute_dtype):
    x = x_ref[...].astype(compute_dtype)
    # sigmoid rides the EUP slot, multiply on the VPU; both hidden under DMA.
    o_ref[...] = (x * jax.nn.sigmoid(x)).astype(o_ref.dtype)


def _sublane_multiple(dtype) -> int:
    # f32 -> 8, bf16 -> 16, int8/fp8 -> 32 (sub-32-bit packing along sublanes)
    itemsize = jnp.dtype(dtype).itemsize
    return max(8, 32 // max(1, itemsize))


def _chip_params():
    """Best-effort generation detection -> (tile_bytes, vmem_limit, multi_tc, bf16_ok)."""
    kind = ""
    try:
        kind = jax.devices()[0].device_kind.lower()
    except Exception:  # pragma: no cover - defensive
        pass

    is_v7 = "v7" in kind
    is_v6 = "v6" in kind
    is_v5e = ("v5e" in kind) or ("v5 lite" in kind) or ("v5litepod" in kind)

    if is_v7:
        tile_bytes = 12 * 1024 * 1024      # short steps on ~3.2 TB/s HBM -> bigger tiles
        vmem_limit = 48 * 1024 * 1024      # 4 x tile (in+out double-buffered) <= 64 MiB
        multi_tc = True                    # 2 TensorCores per chip
        bf16_native = True
    elif is_v6:
        tile_bytes = 8 * 1024 * 1024
        vmem_limit = 48 * 1024 * 1024      # well under 128 MiB physical VMEM
        multi_tc = False
        bf16_native = True
    else:
        # v5e and anything we do not recognize: conservative defaults.
        tile_bytes = 4 * 1024 * 1024
        vmem_limit = 32 * 1024 * 1024
        multi_tc = ("v4" in kind) or ("v5p" in kind)
        bf16_native = not is_v5e and not ("v4" in kind) and (is_v6 or is_v7)

    # Cap the scoped-VMEM request at ~75% of physical capacity when queryable.
    try:
        cap = int(pltpu.get_tpu_info().vmem_capacity_bytes)
        vmem_limit = min(vmem_limit, (cap * 3) // 4)
    except Exception:  # pragma: no cover - defensive
        pass

    return tile_bytes, vmem_limit, multi_tc, bf16_native


def _swish_bulk_2d(x2d: jax.Array, *, tile_bytes: int, vmem_limit: int,
                   multi_tc: bool, compute_dtype) -> jax.Array:
    """Run the Pallas kernel on a lane-dense (rows, lanes) slab."""
    rows, lanes = x2d.shape
    dtype = x2d.dtype
    itemsize = jnp.dtype(dtype).itemsize
    sub = _sublane_multiple(dtype)

    # Rows per tile targeting ~tile_bytes, rounded to the dtype's sublane multiple.
    target_rows = max(sub, (tile_bytes // (lanes * itemsize)) // sub * sub)
    grid = pl.cdiv(rows, target_rows)

    block_rows = rows  # single full-array block by default
    if grid == 1 and multi_tc and rows >= 2 * sub:
        grid = 2  # let both TensorCores run even when one block would fit
    if grid > 1:
        # On multi-TC chips, a small odd grid leaves one core with ~33% more
        # work; round up to an even step count and rebalance the block size.
        if multi_tc and grid <= 8 and (grid % 2 == 1):
            grid += 1
        block_rows = pl.cdiv(pl.cdiv(rows, grid), sub) * sub
        grid = pl.cdiv(rows, block_rows)  # Pallas handles the ragged last block

    kernel = functools.partial(_swish_kernel, compute_dtype=compute_dtype)
    return pl.pallas_call(
        kernel,
        out_shape=jax.ShapeDtypeStruct((rows, lanes), dtype),
        grid_spec=pltpu.PrefetchScalarGridSpec(
            num_scalar_prefetch=0,
            grid=(grid,),
            in_specs=[pl.BlockSpec((block_rows, lanes), lambda i: (i, 0))],
            out_specs=pl.BlockSpec((block_rows, lanes), lambda i: (i, 0)),
        ),
        compiler_params=pltpu.CompilerParams(
            dimension_semantics=("parallel",),
            vmem_limit_bytes=vmem_limit,
        ),
    )(x2d)


def swish(x: jax.Array) -> jax.Array:
    """Applies Swish elementwise, matching torch `inputs * inputs.sigmoid()`."""
    orig_shape = x.shape
    dtype = x.dtype
    n = x.size
    if n == 0:
        return x

    tile_bytes, vmem_limit, multi_tc, bf16_native = _chip_params()
    if dtype == jnp.bfloat16 and bf16_native:
        compute_dtype = jnp.bfloat16
    elif dtype == jnp.float32:
        compute_dtype = jnp.float32
    else:
        compute_dtype = jnp.float32

    # Pick the widest lane width that exactly divides n (wider lane-dense
    # tiles -> larger unmasked stores / bigger contiguous DMAs).
    lanes = 128
    for cand in (1024, 512, 256):
        if n % cand == 0:
            lanes = cand
            break

    x_flat = x.reshape(-1)
    bulk_rows = n // lanes
    bulk_n = bulk_rows * lanes

    if bulk_n == n:
        # Fast path: free reshape, exactly one HBM read + one HBM write.
        out2d = _swish_bulk_2d(
            x_flat.reshape(bulk_rows, lanes),
            tile_bytes=tile_bytes, vmem_limit=vmem_limit,
            multi_tc=multi_tc, compute_dtype=compute_dtype)
        return out2d.reshape(orig_shape)

    # Ragged path: kernel on the divisible bulk, plain-jnp tail (< lanes elems).
    # Avoids the old pad-whole-array + slice-whole-array (~3x HBM traffic).
    pieces = []
    if bulk_rows > 0:
        out2d = _swish_bulk_2d(
            x_flat[:bulk_n].reshape(bulk_rows, lanes),
            tile_bytes=tile_bytes, vmem_limit=vmem_limit,
            multi_tc=multi_tc, compute_dtype=compute_dtype)
        pieces.append(out2d.reshape(-1))
    tail = x_flat[bulk_n:].astype(compute_dtype)
    pieces.append((tail * jax.nn.sigmoid(tail)).astype(dtype))
    return jnp.concatenate(pieces).reshape(orig_shape)


if __name__ == "__main__":
    key = jax.random.PRNGKey(0)

    # Typical NCHW-style input used inside conv modules (fast lane-dense path).
    x = jax.random.normal(key, (2, 4, 16, 16), dtype=jnp.float32)
    y = jax.block_until_ready(swish(x))
    y_ref = x * jax.nn.sigmoid(x)
    assert y.shape == x.shape and y.dtype == x.dtype
    assert jnp.allclose(y, y_ref, atol=1e-6, rtol=1e-6)

    # Odd tiny input: entirely handled by the jnp tail path.
    x2 = jax.random.normal(jax.random.PRNGKey(1), (3, 5, 7), dtype=jnp.float32)
    y2 = jax.block_until_ready(swish(x2))
    y2_ref = x2 * jax.nn.sigmoid(x2)
    assert y2.shape == x2.shape and y2.dtype == x2.dtype
    assert jnp.allclose(y2, y2_ref, atol=1e-6, rtol=1e-6)

    # Ragged input: exercises the bulk(kernel) + tail(jnp) split.
    x3 = jax.random.normal(jax.random.PRNGKey(2), (3, 129), dtype=jnp.float32)
    y3 = jax.block_until_ready(swish(x3))
    y3_ref = x3 * jax.nn.sigmoid(x3)
    assert y3.shape == x3.shape and y3.dtype == x3.dtype
    assert jnp.allclose(y3, y3_ref, atol=1e-6, rtol=1e-6)

    # bf16 input: native bf16 compute on v6e/v7x, f32 internal on v5e.
    x4 = jax.random.normal(jax.random.PRNGKey(3), (2, 8, 32), dtype=jnp.bfloat16)
    y4 = jax.block_until_ready(swish(x4))
    y4_ref = (x4.astype(jnp.float32) * jax.nn.sigmoid(x4.astype(jnp.float32))).astype(jnp.bfloat16)
    assert y4.shape == x4.shape and y4.dtype == x4.dtype
    assert jnp.allclose(y4.astype(jnp.float32), y4_ref.astype(jnp.float32), atol=2e-2, rtol=2e-2)

    print("KERNEL_OK")
</pallas_src>

<mosaic_0001>
module attributes {stable_mosaic.version = 11 : i64} {
  func.func @_swish_kernel(%arg0: i32, %arg1: memref<2x1024xf32, #tpu.memory_space<vmem>>, %arg2: memref<2x1024xf32, #tpu.memory_space<vmem>>) attributes {dimension_semantics = [#tpu.dimension_semantics<parallel>], iteration_bounds = array<i64: 1>, scalar_prefetch = 0 : i64, scratch_operands = 0 : i64, tpu.core_type = #tpu.core_type<tc>, window_params = [{transform_indices = @transform_0, window_bounds = array<i64: 2, 1024>}, {transform_indices = @transform_1, window_bounds = array<i64: 2, 1024>}]} {
    %c0 = arith.constant 0 : index
    %c0_0 = arith.constant 0 : index
    %0 = vector.load %arg1[%c0, %c0_0] : memref<2x1024xf32, #tpu.memory_space<vmem>>, vector<2x1024xf32>
    %1 = arith.negf %0 : vector<2x1024xf32>
    %2 = math.exp %1 : vector<2x1024xf32>
    %cst = arith.constant 1.000000e+00 : f32
    %3 = vector.broadcast %cst : f32 to vector<2x1024xf32>
    %4 = arith.addf %3, %2 : vector<2x1024xf32>
    %5 = arith.divf %3, %4 : vector<2x1024xf32>
    %6 = arith.mulf %0, %5 : vector<2x1024xf32>
    %c0_1 = arith.constant 0 : index
    %c0_2 = arith.constant 0 : index
    %7 = vector.load %arg2[%c0_1, %c0_2] : memref<2x1024xf32, #tpu.memory_space<vmem>>, vector<2x1024xf32>
    tpu.vector_store %arg2[%c0_1, %c0_2], %6 {strides = array<i32>} : memref<2x1024xf32, #tpu.memory_space<vmem>>, vector<2x1024xf32>,
    return
  }
  func.func @transform_0(%arg0: i32) -> (i32, i32) {
    %c0_i32 = arith.constant 0 : i32
    %c0_i32_0 = arith.constant 0 : i32
    return %arg0, %c0_i32 : i32, i32
  }
  func.func @transform_1(%arg0: i32) -> (i32, i32) {
    %c0_i32 = arith.constant 0 : i32
    %c0_i32_0 = arith.constant 0 : i32
    return %arg0, %c0_i32 : i32, i32
  }
}

</mosaic_0001>

<llo_original>
// kernel: tpu_custom_call.1
$region0: #{tpu_custom_call.1}
  #allocation0 [shape = 'u32[]', space=smem, size = 0x4, offset = 0x4, fixed_abs, tag = 'smem constant byte address 0x4 - core index']
  #allocation1 [shape = 'u32[144,128]{1,0:T(1,128)}', space=vmem, size = 0x12000, scoped, tag = 'internal scratch']
  %s0 = inlined_call_operand.hbm [shape: f32[2,1024], index: 0, kind: input, shape index: {}]
  %s1 = inlined_call_operand.hbm [shape: f32[2,1024], index: 1, kind: output, shape index: {}]
  %s2 = sld [smem:[#allocation0]]
  $region18: #{tpu_custom_call.1} parent=0
    _
  %s4 = ssub.s32 1, %s2
  %s5 = scalar_select 0, %s4, %s2
  $region1: #{tpu_custom_call.1} parent=0
    #allocation2 [shape = 'u8[8192]{0}', space=vmem, size = 0x2000, scoped, tag = 'input window, operand 0, single buffered']
    #allocation3 [shape = 's32[1]{0}', space=sflag, size = 0x4, scoped, tag = 'scoped memory for tpu_custom_call.1']
    #allocation4 [shape = 's32[1]{0}', space=sflag, size = 0x4, scoped, tag = 'scoped memory for tpu_custom_call.1']
    #allocation5 [shape = 'u8[8192]{0}', space=vmem, size = 0x2000, scoped, tag = 'output window, operand 0, single buffered']
    %6 = vsyncpa [#allocation3], 0
    %7 = vsyncpa [#allocation4], 0
    // Predicated region
    $region2: #{tpu_custom_call.1} parent=1 // pred_check
      _
    $region3: #{tpu_custom_call.1} parent=1 // pred_check_branch
      %9 = sbr.rel (0) target = $region5
    $region4: #{tpu_custom_call.1} parent=1 // pred_region
      %s11 = ssub.s32 256, 256
      %12 = vsyncadd [#allocation3], %s11
      %s14 = sshll.u32 [#allocation2], 4
      %s15 = int_to_ptr.vmem [resolvable:$true] %s14
      %17 = dma.hbm_to_vmem [thread:$0]  %s0, 256, %s15, [#allocation3]
    $region5: #{tpu_custom_call.1} parent=1 // pred_fallthru
      _
    // Predicated region
    $region6: #{tpu_custom_call.1} parent=1 // pred_check
      _
    $region7: #{tpu_custom_call.1} parent=1 // pred_check_branch
      %19 = sbr.rel (0) target = $region9
    $region8: #{tpu_custom_call.1} parent=1 // pred_region
      %20 = dma.done [#allocation3], 256
    $region9: #{tpu_custom_call.1} parent=1 // pred_fallthru
      _
    %v21 = vld [vmem:[#allocation2] sm:$0xff]
    %v22 = vld [vmem:[#allocation2 + $0x8] sm:$0xff]
    %v23 = vxor.u32 %v21, 2147483648
    %v24 = vxor.u32 %v22, 2147483648
    %v25 = vmul.f32 %v23, 1.442695
    %v26 = vpow.pop %v25
    %v27 = vmul.f32 %v24, 1.442695
    %v28 = vpow.pop %v27
    %v29 = vadd.f32 %v26, 1.0
    %v30 = vadd.f32 %v28, 1.0
    %v31 = vrcp.pop %v29
    %v32 = vmul.f32 1.0, %v31
    %v33 = vrcp.pop %v30
    %v34 = vmul.f32 1.0, %v33
    %v35 = vmul.f32 %v21, %v32
    %v36 = vmul.f32 %v22, %v34
    %37 = vst [vmem:[#allocation5] sm:$0xff] %v35
    %38 = vst [vmem:[#allocation5 + $0x8] sm:$0xff] %v36
    // Predicated region
    $region10: #{tpu_custom_call.1} parent=1 // pred_check
      _
    $region11: #{tpu_custom_call.1} parent=1 // pred_check_branch
      %40 = sbr.rel (0) target = $region13
    $region12: #{tpu_custom_call.1} parent=1 // pred_region
      %s42 = ssub.s32 256, 256
      %43 = vsyncadd [#allocation4], %s42
      %s45 = sshll.u32 [#allocation5], 4
      %s46 = int_to_ptr.vmem [resolvable:$true] %s45
      %48 = dma.vmem_to_hbm [thread:$0]  %s46, 256, %s1, [#allocation4]
    $region13: #{tpu_custom_call.1} parent=1 // pred_fallthru
      _
    // Predicated region
    $region14: #{tpu_custom_call.1} parent=1 // pred_check
      _
    $region15: #{tpu_custom_call.1} parent=1 // pred_check_branch
      %50 = sbr.rel (0) target = $region17
    $region16: #{tpu_custom_call.1} parent=1 // pred_region
      %51 = dma.done [#allocation4], 256
    $region17: #{tpu_custom_call.1} parent=1 // pred_fallthru
      _
    %52 = vsyncpa [#allocation3], 1
    %53 = vsyncpa [#allocation4], 1

</llo_original>
